<compile_context>
chip_gen: v6e
topology: v6e:2x2x1
jax: 0.10.0
libtpu: 0.0.40
codegen_flags: <defaults>
</compile_context>

<pallas_src>
import functools

import jax
import jax.numpy as jnp
from jax.experimental import pallas as pl
from jax.experimental.pallas import tpu as pltpu


def _round_up(x, n):
    return ((x + n - 1) // n) * n


def _mlp_kernel(x_ref, w1_ref, b1_ref, w2_ref, b2_ref, w3_ref, b3_ref, o_ref):
    # One (tm, x_dim) row tile of the flattened input; full MLP fused in-kernel.
    # MXU operands are in the compute dtype (bf16 by default); accumulation,
    # bias adds and ReLUs are f32.
    x = x_ref[...]

    h1 = jnp.dot(x, w1_ref[...], preferred_element_type=jnp.float32)
    h1 = jnp.maximum(h1 + b1_ref[...], 0.0)  # ReLU, f32

    h2 = jnp.dot(h1.astype(w2_ref.dtype), w2_ref[...],
                 preferred_element_type=jnp.float32)
    h2 = jnp.maximum(h2 + b2_ref[...], 0.0)  # ReLU, f32

    mu = jnp.dot(h2.astype(w3_ref.dtype), w3_ref[...],
                 preferred_element_type=jnp.float32)
    o_ref[...] = (mu + b3_ref[...]).astype(o_ref.dtype)


@functools.partial(jax.jit, static_argnames=("tm", "compute_dtype"))
def mlp_forward(x_target, params, *, tm=512, compute_dtype=jnp.bfloat16):
    """x_target: (batch, num_points, x_dim) -> mu: (batch, num_points, y_dim)."""
    w1, b1, w2, b2, w3, b3 = params
    batch, num_points, x_dim = x_target.shape
    h_dim = w1.shape[1]
    h2_dim = w2.shape[1]
    y_dim = w3.shape[1]
    m = batch * num_points

    # MXU operands in compute_dtype (halves the x HBM stream when bf16);
    # biases stay f32 and are added post-accumulation.
    x_flat = x_target.reshape(m, x_dim).astype(compute_dtype)
    w1c = w1.astype(compute_dtype)
    w2c = w2.astype(compute_dtype)
    w3c = w3.astype(compute_dtype)
    b1r = b1.reshape(1, h_dim).astype(jnp.float32)
    b2r = b2.reshape(1, h2_dim).astype(jnp.float32)
    b3r = b3.reshape(1, y_dim).astype(jnp.float32)

    # Large row tile (multiple of 8), clamped to the padded problem size; pad
    # rows so any batch*num_points works and tm can be tuned freely.
    tm_eff = min(_round_up(tm, 8), _round_up(m, 8))
    m_pad = _round_up(m, tm_eff)
    if m_pad != m:
        x_flat = jnp.pad(x_flat, ((0, m_pad - m), (0, 0)))

    grid = (m_pad // tm_eff,)
    full = lambda i: (0, 0)  # weights/biases: same (whole-array) block each step

    itemsize = jnp.dtype(compute_dtype).itemsize
    out_itemsize = jnp.dtype(x_target.dtype).itemsize
    flops = 2 * m_pad * (x_dim * h_dim + h_dim * h2_dim + h2_dim * y_dim)
    bytes_accessed = (
        m_pad * x_dim * itemsize
        + m_pad * y_dim * out_itemsize
        + (w1c.size + w2c.size + w3c.size) * itemsize
        + (b1r.size + b2r.size + b3r.size) * 4
    )

    out_flat = pl.pallas_call(
        _mlp_kernel,
        out_shape=jax.ShapeDtypeStruct((m_pad, y_dim), x_target.dtype),
        grid_spec=pltpu.PrefetchScalarGridSpec(
            num_scalar_prefetch=0,
            grid=grid,
            in_specs=[
                pl.BlockSpec((tm_eff, x_dim), lambda i: (i, 0)),  # x row tile
                pl.BlockSpec(w1c.shape, full),                    # W1 (x_dim, h)
                pl.BlockSpec(b1r.shape, full),                    # b1 (1, h)
                pl.BlockSpec(w2c.shape, full),                    # W2 (h, h//2)
                pl.BlockSpec(b2r.shape, full),                    # b2 (1, h//2)
                pl.BlockSpec(w3c.shape, full),                    # W3 (h//2, y)
                pl.BlockSpec(b3r.shape, full),                    # b3 (1, y)
            ],
            # Block spans the whole last dim -> contiguous writeback DMA/step.
            out_specs=pl.BlockSpec((tm_eff, y_dim), lambda i: (i, 0)),
        ),
        compiler_params=pltpu.CompilerParams(
            dimension_semantics=("parallel",),
        ),
        cost_estimate=pl.CostEstimate(
            flops=flops, transcendentals=0, bytes_accessed=bytes_accessed),
    )(x_flat, w1c, b1r, w2c, b2r, w3c, b3r)

    return out_flat[:m].reshape(batch, num_points, y_dim)


def init_params(key, x_dim, y_dim, h_dim, dtype=jnp.float32):
    """Deterministic init mimicking nn.Linear's U(-1/sqrt(fan_in), 1/sqrt(fan_in))."""
    ks = jax.random.split(key, 6)

    def linear(kw, kb, fan_in, fan_out):
        bound = 1.0 / jnp.sqrt(jnp.asarray(fan_in, dtype))
        w = jax.random.uniform(kw, (fan_in, fan_out), dtype, -bound, bound)
        b = jax.random.uniform(kb, (fan_out,), dtype, -bound, bound)
        return w, b

    w1, b1 = linear(ks[0], ks[1], x_dim, h_dim)
    w2, b2 = linear(ks[2], ks[3], h_dim, h_dim // 2)
    w3, b3 = linear(ks[4], ks[5], h_dim // 2, y_dim)
    return (w1, b1, w2, b2, w3, b3)


def reference_forward(x_target, params, compute_dtype=jnp.bfloat16):
    """Pure-JAX reference with the same compute-dtype casts as the kernel."""
    w1, b1, w2, b2, w3, b3 = params
    b, n, xd = x_target.shape
    x = x_target.reshape(b * n, xd).astype(compute_dtype)
    h1 = jnp.dot(x, w1.astype(compute_dtype), preferred_element_type=jnp.float32)
    h1 = jnp.maximum(h1 + b1, 0.0)
    h2 = jnp.dot(h1.astype(compute_dtype), w2.astype(compute_dtype),
                 preferred_element_type=jnp.float32)
    h2 = jnp.maximum(h2 + b2, 0.0)
    mu = jnp.dot(h2.astype(compute_dtype), w3.astype(compute_dtype),
                 preferred_element_type=jnp.float32)
    mu = mu + b3
    return mu.reshape(b, n, -1).astype(x_target.dtype)


if __name__ == "__main__":
    # Small shapes consistent with the module's forward signature.
    batch, num_points = 2, 8
    x_dim, y_dim, h_dim = 4, 2, 32

    key = jax.random.PRNGKey(0)
    k_x, k_p = jax.random.split(key)

    x_target = jax.random.normal(k_x, (batch, num_points, x_dim), dtype=jnp.float32)
    params = init_params(k_p, x_dim, y_dim, h_dim)

    mu = mlp_forward(x_target, params)  # tm auto-clamps to the tiny demo size
    mu = jax.block_until_ready(mu)

    ref = reference_forward(x_target, params)
    assert mu.shape == (batch, num_points, y_dim)
    assert jnp.allclose(mu, ref, atol=1e-4, rtol=1e-4), float(jnp.max(jnp.abs(mu - ref)))

    print("KERNEL_OK")
</pallas_src>

<mosaic_0001>
module attributes {stable_mosaic.version = 11 : i64} {
  func.func @_mlp_kernel(%arg0: i32, %arg1: memref<16x4xbf16, #tpu.memory_space<vmem>>, %arg2: memref<4x32xbf16, #tpu.memory_space<vmem>>, %arg3: memref<1x32xf32, #tpu.memory_space<vmem>>, %arg4: memref<32x16xbf16, #tpu.memory_space<vmem>>, %arg5: memref<1x16xf32, #tpu.memory_space<vmem>>, %arg6: memref<16x2xbf16, #tpu.memory_space<vmem>>, %arg7: memref<1x2xf32, #tpu.memory_space<vmem>>, %arg8: memref<16x2xf32, #tpu.memory_space<vmem>>) attributes {dimension_semantics = [#tpu.dimension_semantics<parallel>], iteration_bounds = array<i64: 1>, scalar_prefetch = 0 : i64, scratch_operands = 0 : i64, tpu.core_type = #tpu.core_type<tc>, window_params = [{transform_indices = @transform_0, window_bounds = array<i64: 16, 4>}, {pipeline_mode = #tpu.pipeline_mode<synchronous>, transform_indices = @transform_1, window_bounds = array<i64: 4, 32>}, {pipeline_mode = #tpu.pipeline_mode<synchronous>, transform_indices = @transform_2, window_bounds = array<i64: 1, 32>}, {pipeline_mode = #tpu.pipeline_mode<synchronous>, transform_indices = @transform_3, window_bounds = array<i64: 32, 16>}, {pipeline_mode = #tpu.pipeline_mode<synchronous>, transform_indices = @transform_4, window_bounds = array<i64: 1, 16>}, {pipeline_mode = #tpu.pipeline_mode<synchronous>, transform_indices = @transform_5, window_bounds = array<i64: 16, 2>}, {pipeline_mode = #tpu.pipeline_mode<synchronous>, transform_indices = @transform_6, window_bounds = array<i64: 1, 2>}, {transform_indices = @transform_7, window_bounds = array<i64: 16, 2>}]} {
    %c0 = arith.constant 0 : index
    %c0_0 = arith.constant 0 : index
    %0 = vector.load %arg1[%c0, %c0_0] : memref<16x4xbf16, #tpu.memory_space<vmem>>, vector<16x4xbf16>
    %c0_1 = arith.constant 0 : index
    %c0_2 = arith.constant 0 : index
    %1 = vector.load %arg2[%c0_1, %c0_2] : memref<4x32xbf16, #tpu.memory_space<vmem>>, vector<4x32xbf16>
    %cst = arith.constant dense<0.000000e+00> : vector<16x32xf32>
    %2 = tpu.matmul %0, %1, %cst {dimension_numbers = #tpu.dot_dimension_numbers<[1], [0], [0], [1], [0, 0, 1, 1], [], []>} : vector<16x4xbf16>, vector<4x32xbf16>, vector<16x32xf32> -> vector<16x32xf32>
    %c0_3 = arith.constant 0 : index
    %c0_4 = arith.constant 0 : index
    %3 = vector.load %arg3[%c0_3, %c0_4] : memref<1x32xf32, #tpu.memory_space<vmem>>, vector<1x32xf32>
    %4 = vector.broadcast %3 : vector<1x32xf32> to vector<16x32xf32>
    %5 = arith.addf %2, %4 : vector<16x32xf32>
    %cst_5 = arith.constant 0.000000e+00 : f32
    %6 = vector.broadcast %cst_5 : f32 to vector<16x32xf32>
    %7 = arith.maximumf %5, %6 : vector<16x32xf32>
    %8 = arith.truncf %7 : vector<16x32xf32> to vector<16x32xbf16>
    %c0_6 = arith.constant 0 : index
    %c0_7 = arith.constant 0 : index
    %9 = vector.load %arg4[%c0_6, %c0_7] : memref<32x16xbf16, #tpu.memory_space<vmem>>, vector<32x16xbf16>
    %cst_8 = arith.constant dense<0.000000e+00> : vector<16x16xf32>
    %10 = tpu.matmul %8, %9, %cst_8 {dimension_numbers = #tpu.dot_dimension_numbers<[1], [0], [0], [1], [0, 0, 1, 1], [], []>} : vector<16x32xbf16>, vector<32x16xbf16>, vector<16x16xf32> -> vector<16x16xf32>
    %c0_9 = arith.constant 0 : index
    %c0_10 = arith.constant 0 : index
    %11 = vector.load %arg5[%c0_9, %c0_10] : memref<1x16xf32, #tpu.memory_space<vmem>>, vector<1x16xf32>
    %12 = vector.broadcast %11 : vector<1x16xf32> to vector<16x16xf32>
    %13 = arith.addf %10, %12 : vector<16x16xf32>
    %cst_11 = arith.constant 0.000000e+00 : f32
    %14 = vector.broadcast %cst_11 : f32 to vector<16x16xf32>
    %15 = arith.maximumf %13, %14 : vector<16x16xf32>
    %16 = arith.truncf %15 : vector<16x16xf32> to vector<16x16xbf16>
    %c0_12 = arith.constant 0 : index
    %c0_13 = arith.constant 0 : index
    %17 = vector.load %arg6[%c0_12, %c0_13] : memref<16x2xbf16, #tpu.memory_space<vmem>>, vector<16x2xbf16>
    %cst_14 = arith.constant dense<0.000000e+00> : vector<16x2xf32>
    %18 = tpu.matmul %16, %17, %cst_14 {dimension_numbers = #tpu.dot_dimension_numbers<[1], [0], [0], [1], [0, 0, 1, 1], [], []>} : vector<16x16xbf16>, vector<16x2xbf16>, vector<16x2xf32> -> vector<16x2xf32>
    %c0_15 = arith.constant 0 : index
    %c0_16 = arith.constant 0 : index
    %19 = vector.load %arg7[%c0_15, %c0_16] : memref<1x2xf32, #tpu.memory_space<vmem>>, vector<1x2xf32>
    %20 = vector.broadcast %19 : vector<1x2xf32> to vector<16x2xf32>
    %21 = arith.addf %18, %20 : vector<16x2xf32>
    %c0_17 = arith.constant 0 : index
    %c0_18 = arith.constant 0 : index
    %22 = vector.load %arg8[%c0_17, %c0_18] : memref<16x2xf32, #tpu.memory_space<vmem>>, vector<16x2xf32>
    tpu.vector_store %arg8[%c0_17, %c0_18], %21 {strides = array<i32>} : memref<16x2xf32, #tpu.memory_space<vmem>>, vector<16x2xf32>,
    return
  }
  func.func @transform_0(%arg0: i32) -> (i32, i32) {
    %c0_i32 = arith.constant 0 : i32
    %c0_i32_0 = arith.constant 0 : i32
    return %arg0, %c0_i32 : i32, i32
  }
  func.func @transform_1(%arg0: i32) -> (i32, i32) {
    %c0_i32 = arith.constant 0 : i32
    %c0_i32_0 = arith.constant 0 : i32
    %c0_i32_1 = arith.constant 0 : i32
    return %c0_i32, %c0_i32_0 : i32, i32
  }
  func.func @transform_2(%arg0: i32) -> (i32, i32) {
    %c0_i32 = arith.constant 0 : i32
    %c0_i32_0 = arith.constant 0 : i32
    %c0_i32_1 = arith.constant 0 : i32
    return %c0_i32, %c0_i32_0 : i32, i32
  }
  func.func @transform_3(%arg0: i32) -> (i32, i32) {
    %c0_i32 = arith.constant 0 : i32
    %c0_i32_0 = arith.constant 0 : i32
    %c0_i32_1 = arith.constant 0 : i32
    return %c0_i32, %c0_i32_0 : i32, i32
  }
  func.func @transform_4(%arg0: i32) -> (i32, i32) {
    %c0_i32 = arith.constant 0 : i32
    %c0_i32_0 = arith.constant 0 : i32
    %c0_i32_1 = arith.constant 0 : i32
    return %c0_i32, %c0_i32_0 : i32, i32
  }
  func.func @transform_5(%arg0: i32) -> (i32, i32) {
    %c0_i32 = arith.constant 0 : i32
    %c0_i32_0 = arith.constant 0 : i32
    %c0_i32_1 = arith.constant 0 : i32
    return %c0_i32, %c0_i32_0 : i32, i32
  }
  func.func @transform_6(%arg0: i32) -> (i32, i32) {
    %c0_i32 = arith.constant 0 : i32
    %c0_i32_0 = arith.constant 0 : i32
    %c0_i32_1 = arith.constant 0 : i32
    return %c0_i32, %c0_i32_0 : i32, i32
  }
  func.func @transform_7(%arg0: i32) -> (i32, i32) {
    %c0_i32 = arith.constant 0 : i32
    %c0_i32_0 = arith.constant 0 : i32
    return %arg0, %c0_i32 : i32, i32
  }
}

</mosaic_0001>

<llo_original>
// kernel: mlp_forward.1
$region0: #{mlp_forward.1}
  #allocation0 [shape = 'u32[]', space=smem, size = 0x4, offset = 0x4, fixed_abs, tag = 'smem constant byte address 0x4 - core index']
  #allocation1 [shape = 'u32[144,128]{1,0:T(1,128)}', space=vmem, size = 0x12000, scoped, tag = 'internal scratch']
  %s0 = inlined_call_operand.vmem [shape: bf16[16,4], index: 0, kind: input, shape index: {}]
  %s1 = inlined_call_operand.vmem [shape: bf16[4,32], index: 1, kind: input, shape index: {}]
  %s2 = inlined_call_operand.vmem [shape: f32[1,32], index: 2, kind: input, shape index: {}]
  %s3 = inlined_call_operand.vmem [shape: bf16[32,16], index: 3, kind: input, shape index: {}]
  %s4 = inlined_call_operand.vmem [shape: f32[1,16], index: 4, kind: input, shape index: {}]
  %s5 = inlined_call_operand.vmem [shape: bf16[16,2], index: 5, kind: input, shape index: {}]
  %s6 = inlined_call_operand.vmem [shape: f32[1,2], index: 6, kind: input, shape index: {}]
  %s7 = inlined_call_operand.vmem [shape: f32[16,2], index: 7, kind: output, shape index: {}]
  %s8 = sld [smem:[#allocation0]]
  $region38: #{mlp_forward.1} parent=0
    _
  %s10 = ssub.s32 1, %s8
  %s11 = scalar_select 0, %s10, %s8
  // Predicated region
  $region2: #{mlp_forward.1} parent=0 // pred_check
    _
  $region3: #{mlp_forward.1} parent=0 // pred_check_branch
    %13 = sbr.rel (0) target = $region5
  $region4: #{mlp_forward.1} parent=0 // pred_region
    _
  $region5: #{mlp_forward.1} parent=0 // pred_fallthru
    _
  // Predicated region
  $region6: #{mlp_forward.1} parent=0 // pred_check
    _
  $region7: #{mlp_forward.1} parent=0 // pred_check_branch
    %15 = sbr.rel (0) target = $region9
  $region8: #{mlp_forward.1} parent=0 // pred_region
    _
  $region9: #{mlp_forward.1} parent=0 // pred_fallthru
    _
  // Predicated region
  $region10: #{mlp_forward.1} parent=0 // pred_check
    _
  $region11: #{mlp_forward.1} parent=0 // pred_check_branch
    %17 = sbr.rel (0) target = $region13
  $region12: #{mlp_forward.1} parent=0 // pred_region
    _
  $region13: #{mlp_forward.1} parent=0 // pred_fallthru
    _
  // Predicated region
  $region14: #{mlp_forward.1} parent=0 // pred_check
    _
  $region15: #{mlp_forward.1} parent=0 // pred_check_branch
    %19 = sbr.rel (0) target = $region17
  $region16: #{mlp_forward.1} parent=0 // pred_region
    _
  $region17: #{mlp_forward.1} parent=0 // pred_fallthru
    _
  // Predicated region
  $region18: #{mlp_forward.1} parent=0 // pred_check
    _
  $region19: #{mlp_forward.1} parent=0 // pred_check_branch
    %21 = sbr.rel (0) target = $region21
  $region20: #{mlp_forward.1} parent=0 // pred_region
    _
  $region21: #{mlp_forward.1} parent=0 // pred_fallthru
    _
  // Predicated region
  $region22: #{mlp_forward.1} parent=0 // pred_check
    _
  $region23: #{mlp_forward.1} parent=0 // pred_check_branch
    %23 = sbr.rel (0) target = $region25
  $region24: #{mlp_forward.1} parent=0 // pred_region
    _
  $region25: #{mlp_forward.1} parent=0 // pred_fallthru
    _
  // Predicated region
  $region26: #{mlp_forward.1} parent=0 // pred_check
    _
  $region27: #{mlp_forward.1} parent=0 // pred_check_branch
    %25 = sbr.rel (0) target = $region29
  $region28: #{mlp_forward.1} parent=0 // pred_region
    _
  $region29: #{mlp_forward.1} parent=0 // pred_fallthru
    _
  %v27 = vld [vmem:[%s0] sm:$0xf]
  %v28 = vld [vmem:[%s0 + $0x4] sm:$0xf]
  %v29 = vld [vmem:[%s1] sm:$0x3]
  %v30 = vld [vmem:[%s2] sm:$0x1]
  %v32 = vlaneseq
  %v33 = vshrl.u32 %v32, 7
  %v34 = vsub.s32 0, %v33
  %v35 = vrot.slane %v30, %v34
  %v39 = vunpack.c.l.b16 %v27
  %v40 = vunpack.c.l.b16 %v28
  %v41 = vpack.c.b16 %v40, %v39
  %vm42 = vcmask 31744
  %v44 = vsel %vm42, %v41, 0
  %vm46 = vcmask 1041408
  %v48 = vsel %vm46, %v29, 0
  %50 = vmatprep.subr.bf16.mxu0 0
  %51 = vmatpush1.bf16.msra.mxu0 0
  %52 = vmatprep.subr.bf16.mxu0 0
  %53 = vmatpush1.bf16.msra.mxu0 0
  %54 = vmatprep.subr.bf16.mxu0 0
  %55 = vmatpush1.bf16.msra.mxu0 0
  %56 = vmatprep.subr.bf16.mxu0 0
  %57 = vmatpush1.bf16.msra.mxu0 0
  %58 = vmatprep.subr.bf16.mxu0 0
  %59 = vmatpush1.bf16.msra.mxu0 0
  %60 = vmatprep.subr.bf16.mxu0 0
  %61 = vmatpush1.bf16.msra.mxu0 0
  %62 = vmatprep.subr.bf16.mxu0 0
  %63 = vmatpush1.bf16.msra.mxu0 0
  %64 = vmatprep.subr.bf16.mxu0 0
  %65 = vmatpush1.bf16.msra.mxu0 %v48
  %66 = vmatprep.subr.bf16.mxu0 0
  %67 = vmatpush2.bf16.msra.mxu0 0
  %68 = vmatprep.subr.bf16.mxu0 0
  %69 = vmatpush2.bf16.msra.mxu0 0
  %70 = vmatprep.subr.bf16.mxu0 0
  %71 = vmatpush2.bf16.msra.mxu0 0
  %72 = vmatprep.subr.bf16.mxu0 0
  %73 = vmatpush2.bf16.msra.mxu0 0
  %74 = vmatprep.subr.bf16.mxu0 0
  %75 = vmatpush2.bf16.msra.mxu0 0
  %76 = vmatprep.subr.bf16.mxu0 0
  %77 = vmatpush2.bf16.msra.mxu0 0
  %78 = vmatprep.subr.bf16.mxu0 0
  %79 = vmatpush2.bf16.msra.mxu0 0
  %80 = vmatprep.subr.bf16.mxu0 0
  %81 = vmatpush2.bf16.msra.mxu0 0
  %82 = vmatprep.mubr.bf16.mxu0 0
  %83 = vmatmul.mubr.bf16.gmra.mxu0 %v44
  %v84 = vpop.f32.mrf.mxu0
  %v85 = vadd.f32 %v35, %v84
  %v86 = vpop.f32.mrf.mxu0
  %v87 = vpop.f32.mrf.mxu0
  %v88 = vadd.f32 %v35, %v87
  %v89 = vpop.f32.mrf.mxu0
  %90 = vdwg.mxu0
  %v91 = vmax.f32 %v85, 0.0
  %v92 = vmax.f32 %v88, 0.0
  %v93 = vpack.c.bf16 %v92, %v91
  %v94 = vld [vmem:[%s3] sm:$0xf]
  %v95 = vld [vmem:[%s3 + $0x4] sm:$0xf]
  %v96 = vld [vmem:[%s3 + $0x8] sm:$0xf]
  %v97 = vld [vmem:[%s3 + $0xc] sm:$0xf]
  %v98 = vld [vmem:[%s4] sm:$0x1]
  %v100 = vlaneseq
  %v101 = vshrl.u32 %v100, 7
  %v102 = vsub.s32 0, %v101
  %v103 = vrot.slane %v98, %v102
  %v109 = vunpack.c.l.b16 %v94
  %v110 = vunpack.c.l.b16 %v95
  %v111 = vunpack.c.l.b16 %v96
  %v112 = vunpack.c.l.b16 %v97
  %v113 = vpack.c.b16 %v110, %v109
  %v114 = vpack.c.b16 %v112, %v111
  %vm117 = vcmask 261120
  %v119 = vsel %vm117, %v93, 0
  %121 = vmatprep.subr.bf16.mxu0 0
  %122 = vmatpush1.bf16.msra.mxu0 0
  %123 = vmatprep.subr.bf16.mxu0 0
  %124 = vmatpush1.bf16.msra.mxu0 0
  %125 = vmatprep.subr.bf16.mxu0 0
  %126 = vmatpush1.bf16.msra.mxu0 0
  %127 = vmatprep.subr.bf16.mxu0 0
  %128 = vmatpush1.bf16.msra.mxu0 0
  %129 = vmatprep.subr.bf16.mxu0 0
  %130 = vmatpush1.bf16.msra.mxu0 0
  %131 = vmatprep.subr.bf16.mxu0 0
  %132 = vmatpush1.bf16.msra.mxu0 0
  %133 = vmatprep.subr.bf16.mxu0 0
  %134 = vmatpush1.bf16.msra.mxu0 %v114
  %135 = vmatprep.subr.bf16.mxu0 0
  %136 = vmatpush1.bf16.msra.mxu0 %v113
  %137 = vmatprep.subr.bf16.mxu0 0
  %138 = vmatpush2.bf16.msra.mxu0 0
  %139 = vmatprep.subr.bf16.mxu0 0
  %140 = vmatpush2.bf16.msra.mxu0 0
  %141 = vmatprep.subr.bf16.mxu0 0
  %142 = vmatpush2.bf16.msra.mxu0 0
  %143 = vmatprep.subr.bf16.mxu0 0
  %144 = vmatpush2.bf16.msra.mxu0 0
  %145 = vmatprep.subr.bf16.mxu0 0
  %146 = vmatpush2.bf16.msra.mxu0 0
  %147 = vmatprep.subr.bf16.mxu0 0
  %148 = vmatpush2.bf16.msra.mxu0 0
  %149 = vmatprep.subr.bf16.mxu0 0
  %150 = vmatpush2.bf16.msra.mxu0 0
  %151 = vmatprep.subr.bf16.mxu0 0
  %152 = vmatpush2.bf16.msra.mxu0 0
  %153 = vmatprep.mubr.bf16.mxu0 0
  %154 = vmatmul.mubr.bf16.gmra.mxu0 %v119
  %v155 = vpop.f32.mrf.mxu0
  %v156 = vadd.f32 %v103, %v155
  %v157 = vpop.f32.mrf.mxu0
  %v158 = vpop.f32.mrf.mxu0
  %v159 = vadd.f32 %v103, %v158
  %v160 = vpop.f32.mrf.mxu0
  %161 = vdwg.mxu0
  %v162 = vmax.f32 %v156, 0.0
  %v163 = vmax.f32 %v159, 0.0
  %v164 = vpack.c.bf16 %v163, %v162
  %v165 = vld [vmem:[%s5] sm:$0xf]
  %v166 = vld [vmem:[%s5 + $0x4] sm:$0xf]
  %v167 = vld [vmem:[%s6] sm:$0x1]
  %v169 = vlaneseq
  %v170 = vshrl.u32 %v169, 7
  %v171 = vsub.s32 0, %v170
  %v172 = vrot.slane %v167, %v171
  %v176 = vunpack.c.l.b16 %v165
  %v177 = vunpack.c.l.b16 %v166
  %v178 = vpack.c.b16 %v177, %v176
  %vm180 = vcmask 130048
  %v182 = vsel %vm180, %v164, 0
  %184 = vmatprep.subr.bf16.mxu0 0
  %185 = vmatpush1.bf16.msra.mxu0 0
  %186 = vmatprep.subr.bf16.mxu0 0
  %187 = vmatpush1.bf16.msra.mxu0 0
  %188 = vmatprep.subr.bf16.mxu0 0
  %189 = vmatpush1.bf16.msra.mxu0 0
  %190 = vmatprep.subr.bf16.mxu0 0
  %191 = vmatpush1.bf16.msra.mxu0 0
  %192 = vmatprep.subr.bf16.mxu0 0
  %193 = vmatpush1.bf16.msra.mxu0 0
  %194 = vmatprep.subr.bf16.mxu0 0
  %195 = vmatpush1.bf16.msra.mxu0 0
  %196 = vmatprep.subr.bf16.mxu0 0
  %197 = vmatpush1.bf16.msra.mxu0 0
  %198 = vmatprep.subr.bf16.mxu0 0
  %199 = vmatpush1.bf16.msra.mxu0 %v178
  %200 = vmatprep.subr.bf16.mxu0 0
  %201 = vmatpush2.bf16.msra.mxu0 0
  %202 = vmatprep.subr.bf16.mxu0 0
  %203 = vmatpush2.bf16.msra.mxu0 0
  %204 = vmatprep.subr.bf16.mxu0 0
  %205 = vmatpush2.bf16.msra.mxu0 0
  %206 = vmatprep.subr.bf16.mxu0 0
  %207 = vmatpush2.bf16.msra.mxu0 0
  %208 = vmatprep.subr.bf16.mxu0 0
  %209 = vmatpush2.bf16.msra.mxu0 0
  %210 = vmatprep.subr.bf16.mxu0 0
  %211 = vmatpush2.bf16.msra.mxu0 0
  %212 = vmatprep.subr.bf16.mxu0 0
  %213 = vmatpush2.bf16.msra.mxu0 0
  %214 = vmatprep.subr.bf16.mxu0 0
  %215 = vmatpush2.bf16.msra.mxu0 0
  %216 = vmatprep.mubr.bf16.mxu0 0
  %217 = vmatmul.mubr.bf16.gmra.mxu0 %v182
  %v218 = vpop.f32.mrf.mxu0
  %v219 = vadd.f32 %v172, %v218
  %v220 = vpop.f32.mrf.mxu0
  %v221 = vpop.f32.mrf.mxu0
  %v222 = vadd.f32 %v172, %v221
  %v223 = vpop.f32.mrf.mxu0
  %224 = vdwg.mxu0
  %vm225 = vcmask 15360
  %226 = vst.msk [vmem:[%s7] sm:$0xff] %vm225, %v219
  %227 = vst.msk [vmem:[%s7 + $0x8] sm:$0xff] %vm225, %v222
  // Predicated region
  $region30: #{mlp_forward.1} parent=0 // pred_check
    _
  $region31: #{mlp_forward.1} parent=0 // pred_check_branch
    %229 = sbr.rel (0) target = $region33
  $region32: #{mlp_forward.1} parent=0 // pred_region
    _
  $region33: #{mlp_forward.1} parent=0 // pred_fallthru
    _
  // Predicated region
  $region34: #{mlp_forward.1} parent=0 // pred_check
    _
  $region35: #{mlp_forward.1} parent=0 // pred_check_branch
    %231 = sbr.rel (0) target = $region37
  $region36: #{mlp_forward.1} parent=0 // pred_region
    _
  $region37: #{mlp_forward.1} parent=0 // pred_fallthru
    _

</llo_original>
